<compile_context>
chip_gen: v5e
topology: v5e:2x2
jax: 0.10.0
libtpu: 0.0.40
codegen_flags: <defaults>
</compile_context>

<pallas_src>
import numpy as np
import jax
import jax.numpy as jnp
from jax.experimental import pallas as pl
from jax.experimental.pallas import tpu as pltpu


# --------------------------------------------------------------------------
# Fused kernel: (folded spectral filter + pool + sigmoid) x2  ->  MLP
# --------------------------------------------------------------------------
def spectral_gnn_kernel(x_ref, m1_ref, m2_ref, bias_ref, w1_ref, w2_ref, o_ref):
    # x_ref   : (B, G0*N)        flattened input node signals (feature-major)
    # m1_ref  : (3, G0*N, F1*N)  layer-1 folded spectral operator + its two
    #                            node-shifted copies (1-hop ring neighborhood)
    # m2_ref  : (3, F1*N, F2*N)  layer-2 folded operator (same 3 variants)
    # bias_ref: (4, 1, 128)      [bias1_flat, bias2_flat, mlp_b1_pad, mlp_b2_pad]
    # w1_ref  : (F2*N, 128)      MLP-1 weight, zero-padded to 128 output lanes
    # w2_ref  : (128, 128)       MLP-2 weight, zero-padded (rows >= H1 and cols
    #                            >= H2 are zero, so padding never leaks)
    # o_ref   : (B, 128)         padded output; wrapper slices [:, :H2]
    f32 = jnp.float32

    def sigmoid(v):
        return 1.0 / (1.0 + jnp.exp(-v))

    def folded_layer(y, m_ref, b):
        # y: (B, G*N).  Max over the 1-hop neighborhood commutes with the
        # monotone sigmoid, and the per-feature bias is node-constant, so:
        #   pool(sigmoid(filter(y) + b)) == sigmoid(max(shifted filters(y)) + b)
        u  = jnp.dot(y, m_ref[0], preferred_element_type=f32)   # node i
        up = jnp.dot(y, m_ref[1], preferred_element_type=f32)   # node i+1
        um = jnp.dot(y, m_ref[2], preferred_element_type=f32)   # node i-1
        return sigmoid(jnp.maximum(u, jnp.maximum(up, um)) + b)

    y1 = folded_layer(x_ref[...], m1_ref, bias_ref[0])          # (B, F1*N)
    y2 = folded_layer(y1,        m2_ref, bias_ref[1])           # (B, F2*N) = MLP input
    hdn = sigmoid(jnp.dot(y2, w1_ref[...], preferred_element_type=f32)
                  + bias_ref[2])                                 # (B, 128)
    out = jnp.dot(hdn, w2_ref[...], preferred_element_type=f32) + bias_ref[3]
    o_ref[...] = out.astype(o_ref.dtype)                         # single lane-dense store


def spectral_gnn_forward(x, m1, m2, bias_pack, w1p, w2p, n_out):
    B = x.shape[0]
    pad = w2p.shape[1]
    xf = x.reshape(B, -1)                   # (B, G0*N): feature-major flatten (free)
    args = (xf, m1, m2, bias_pack, w1p, w2p)

    # Advisory cost hint so XLA does not serialize surrounding work on this call.
    flops = int(2 * B * (m1.size + m2.size + w1p.size + w2p.size))
    trans = int(B * (m1.shape[2] + m2.shape[2] + w1p.shape[1]))
    bytes_accessed = int(sum(int(a.size) for a in args) * 4 + B * pad * 4)

    out = pl.pallas_call(
        spectral_gnn_kernel,
        out_shape=jax.ShapeDtypeStruct((B, pad), jnp.float32),
        in_specs=[pl.BlockSpec(memory_space=pltpu.MemorySpace.VMEM)] * len(args),
        out_specs=pl.BlockSpec(memory_space=pltpu.MemorySpace.VMEM),
        cost_estimate=pl.CostEstimate(flops=flops, transcendentals=trans,
                                      bytes_accessed=bytes_accessed),
    )(*args)
    return out[:, :n_out]


# --------------------------------------------------------------------------
# Driver
# --------------------------------------------------------------------------
if __name__ == "__main__":
    key = jax.random.PRNGKey(0)

    # ---- SpectralGNN hyperparameters (small, consistent with the module) ----
    B = 2
    N = 16                        # number of graph nodes
    dimNodeSignals = [4, 8, 8]    # F: input feature dim, per-layer output dims
    nCoeff = [N, N]               # M == N -> spline-interpolation branch inert
    nSelectedNodes = [N, N]       # keep all nodes after pooling
    poolingSize = [1, 1]          # 1-hop local max pooling
    dimLayersMLP = [32, 4]
    L = len(nCoeff)
    PAD = 128

    # ---- Graph structure: ring graph; GSO = A / lambda_max(A) (E = 1) ----
    A = np.zeros((N, N), np.float32)
    for i in range(N):
        A[i, (i + 1) % N] = 1.0
        A[i, (i - 1) % N] = 1.0
    S = A / np.max(np.abs(np.linalg.eigvalsh(A)))
    _, V = np.linalg.eigh(S)                  # S = V diag(e) V^T (symmetric)
    gft = jnp.asarray(V, jnp.float32)         # x @ gft  == V^H x  (per row)
    igft = jnp.asarray(V.T, jnp.float32)      # z @ igft == V z
    mask = jnp.asarray(((A + np.eye(N, dtype=np.float32)) > 0).astype(np.float32))

    # ---- Deterministic parameter init (same shapes as gml.SpectralGF / nn.Linear) ----
    layer_params = []
    for l in range(L):
        G, Fo, M = dimNodeSignals[l], dimNodeSignals[l + 1], nCoeff[l]
        key, k1, k2 = jax.random.split(key, 3)
        stdv = 1.0 / np.sqrt(G * M)
        h = jax.random.uniform(k1, (Fo, G, M), jnp.float32, -stdv, stdv)
        b = jax.random.uniform(k2, (Fo, 1), jnp.float32, -stdv, stdv)
        layer_params.append((h, b))

    Din = dimNodeSignals[-1] * nSelectedNodes[-1]      # F[-1] * N[-1] = 128
    H1, H2 = dimLayersMLP
    key, k1, k2, k3, k4 = jax.random.split(key, 5)
    s1 = 1.0 / np.sqrt(Din)
    W1 = jax.random.uniform(k1, (Din, H1), jnp.float32, -s1, s1)
    b1 = jax.random.uniform(k2, (1, H1), jnp.float32, -s1, s1)
    s2 = 1.0 / np.sqrt(H1)
    W2 = jax.random.uniform(k3, (H1, H2), jnp.float32, -s2, s2)
    b2 = jax.random.uniform(k4, (1, H2), jnp.float32, -s2, s2)

    # ---- One-time host-side parameter folding (float64 einsum, cast to f32) ----
    V64 = V.astype(np.float64)

    def fold_layer(h):
        # M4[g, j, f, i] = sum_m V[j,m] * h[f,g,m] * V[i,m]   (= V diag(h_fg) V^T)
        M4 = np.einsum("jm,fgm,im->gjfi", V64, np.asarray(h, np.float64), V64)
        G, _, Fo, _ = M4.shape
        variants = [M4,                        # node i itself
                    np.roll(M4, -1, axis=3),   # neighbor i+1 (ring wraps)
                    np.roll(M4, +1, axis=3)]   # neighbor i-1
        return jnp.asarray(np.stack([m.reshape(G * N, Fo * N) for m in variants])
                           .astype(np.float32))

    (h1, bias1), (h2, bias2) = layer_params
    M1 = fold_layer(h1)                        # (3, G0*N, F1*N) = (3, 64, 128)
    M2 = fold_layer(h2)                        # (3, F1*N, F2*N) = (3, 128, 128)
    assert dimNodeSignals[1] * N == PAD and dimNodeSignals[2] * N == PAD

    bias1_flat = np.repeat(np.asarray(bias1, np.float32).reshape(-1), N)   # (F1*N,)
    bias2_flat = np.repeat(np.asarray(bias2, np.float32).reshape(-1), N)   # (F2*N,)
    mb1_pad = np.zeros((PAD,), np.float32); mb1_pad[:H1] = np.asarray(b1).reshape(-1)
    mb2_pad = np.zeros((PAD,), np.float32); mb2_pad[:H2] = np.asarray(b2).reshape(-1)
    bias_pack = jnp.asarray(
        np.stack([bias1_flat, bias2_flat, mb1_pad, mb2_pad]).reshape(4, 1, PAD))

    W1p = np.zeros((Din, PAD), np.float32); W1p[:, :H1] = np.asarray(W1)
    W2p = np.zeros((PAD, PAD), np.float32); W2p[:H1, :H2] = np.asarray(W2)
    W1p, W2p = jnp.asarray(W1p), jnp.asarray(W2p)

    # ---- Input: batchSize x dimFeatures x numberNodes ----
    key, kx = jax.random.split(key)
    x = jax.random.normal(kx, (B, dimNodeSignals[0], N), jnp.float32)

    forward = jax.jit(lambda xin: spectral_gnn_forward(
        xin, M1, M2, bias_pack, W1p, W2p, H2))
    out = jax.block_until_ready(forward(x))
    assert out.shape == (B, dimLayersMLP[-1])

    # ---- Pure-JAX reference mirroring the PyTorch module ----
    hi = jax.lax.Precision.HIGHEST

    def reference(xin):
        y = xin
        for (h, b) in layer_params:
            xs = jnp.einsum("bgn,nm->bgm", y, gft, precision=hi)       # V^H x
            z = jnp.einsum("fgm,bgm->bfm", h, xs, precision=hi)        # multipliers
            u = jnp.einsum("bfm,mn->bfn", z, igft, precision=hi) + b[None, :, :]
            s = jax.nn.sigmoid(u)
            g = jnp.where(mask[None, None, :, :] > 0, s[:, :, None, :], -1e30)
            y = jnp.max(g, axis=-1)                                     # 1-hop max pool
        yf = y.reshape(B, -1)                                           # feature-major
        hdn = jax.nn.sigmoid(jnp.dot(yf, W1, precision=hi) + b1)
        return jnp.dot(hdn, W2, precision=hi) + b2

    ref = jax.block_until_ready(reference(x))
    # Tolerance covers MXU f32 multi-pass accumulation and the (exact-in-math)
    # operator-fold reassociation vs. the factored XLA reference.
    np.testing.assert_allclose(np.asarray(out), np.asarray(ref), rtol=2e-3, atol=2e-3)

    print("KERNEL_OK")
</pallas_src>

<mosaic_0001>
module attributes {stable_mosaic.version = 11 : i64} {
  func.func @spectral_gnn_kernel(%arg0: memref<2x64xf32, #tpu.memory_space<vmem>>, %arg1: memref<3x64x128xf32, #tpu.memory_space<vmem>>, %arg2: memref<3x128x128xf32, #tpu.memory_space<vmem>>, %arg3: memref<4x1x128xf32, #tpu.memory_space<vmem>>, %arg4: memref<128x128xf32, #tpu.memory_space<vmem>>, %arg5: memref<128x128xf32, #tpu.memory_space<vmem>>, %arg6: memref<2x128xf32, #tpu.memory_space<vmem>>) attributes {dimension_semantics = [], scalar_prefetch = 0 : i64, scratch_operands = 0 : i64, tpu.core_type = #tpu.core_type<tc>} {
    %c0 = arith.constant 0 : index
    %c0_0 = arith.constant 0 : index
    %0 = vector.load %arg0[%c0, %c0_0] : memref<2x64xf32, #tpu.memory_space<vmem>>, vector<2x64xf32>
    %c0_1 = arith.constant 0 : index
    %c0_2 = arith.constant 0 : index
    %c0_3 = arith.constant 0 : index
    %1 = vector.load %arg3[%c0_1, %c0_2, %c0_3] : memref<4x1x128xf32, #tpu.memory_space<vmem>>, vector<1x1x128xf32>
    %2 = vector.shape_cast %1 : vector<1x1x128xf32> to vector<1x128xf32>
    %c0_4 = arith.constant 0 : index
    %c0_5 = arith.constant 0 : index
    %c0_6 = arith.constant 0 : index
    %3 = vector.load %arg1[%c0_4, %c0_5, %c0_6] : memref<3x64x128xf32, #tpu.memory_space<vmem>>, vector<1x64x128xf32>
    %4 = vector.shape_cast %3 : vector<1x64x128xf32> to vector<64x128xf32>
    %cst = arith.constant dense<0.000000e+00> : vector<2x128xf32>
    %5 = tpu.matmul %0, %4, %cst {dimension_numbers = #tpu.dot_dimension_numbers<[1], [0], [0], [1], [0, 0, 1, 1], [], []>} : vector<2x64xf32>, vector<64x128xf32>, vector<2x128xf32> -> vector<2x128xf32>
    %c1 = arith.constant 1 : index
    %c0_7 = arith.constant 0 : index
    %c0_8 = arith.constant 0 : index
    %6 = vector.load %arg1[%c1, %c0_7, %c0_8] : memref<3x64x128xf32, #tpu.memory_space<vmem>>, vector<1x64x128xf32>
    %7 = vector.shape_cast %6 : vector<1x64x128xf32> to vector<64x128xf32>
    %cst_9 = arith.constant dense<0.000000e+00> : vector<2x128xf32>
    %8 = tpu.matmul %0, %7, %cst_9 {dimension_numbers = #tpu.dot_dimension_numbers<[1], [0], [0], [1], [0, 0, 1, 1], [], []>} : vector<2x64xf32>, vector<64x128xf32>, vector<2x128xf32> -> vector<2x128xf32>
    %c2 = arith.constant 2 : index
    %c0_10 = arith.constant 0 : index
    %c0_11 = arith.constant 0 : index
    %9 = vector.load %arg1[%c2, %c0_10, %c0_11] : memref<3x64x128xf32, #tpu.memory_space<vmem>>, vector<1x64x128xf32>
    %10 = vector.shape_cast %9 : vector<1x64x128xf32> to vector<64x128xf32>
    %cst_12 = arith.constant dense<0.000000e+00> : vector<2x128xf32>
    %11 = tpu.matmul %0, %10, %cst_12 {dimension_numbers = #tpu.dot_dimension_numbers<[1], [0], [0], [1], [0, 0, 1, 1], [], []>} : vector<2x64xf32>, vector<64x128xf32>, vector<2x128xf32> -> vector<2x128xf32>
    %12 = arith.maximumf %8, %11 : vector<2x128xf32>
    %13 = arith.maximumf %5, %12 : vector<2x128xf32>
    %14 = vector.broadcast %2 : vector<1x128xf32> to vector<2x128xf32>
    %15 = arith.addf %13, %14 : vector<2x128xf32>
    %cst_13 = arith.constant 0.000000e+00 : f32
    %16 = vector.broadcast %cst_13 : f32 to vector<2x128xf32>
    %17 = arith.subf %16, %15 : vector<2x128xf32>
    %18 = math.exp %17 : vector<2x128xf32>
    %cst_14 = arith.constant 1.000000e+00 : f32
    %19 = vector.broadcast %cst_14 : f32 to vector<2x128xf32>
    %20 = arith.addf %19, %18 : vector<2x128xf32>
    %cst_15 = arith.constant 1.000000e+00 : f32
    %21 = vector.broadcast %cst_15 : f32 to vector<2x128xf32>
    %22 = arith.divf %21, %20 : vector<2x128xf32>
    %c1_16 = arith.constant 1 : index
    %c0_17 = arith.constant 0 : index
    %c0_18 = arith.constant 0 : index
    %23 = vector.load %arg3[%c1_16, %c0_17, %c0_18] : memref<4x1x128xf32, #tpu.memory_space<vmem>>, vector<1x1x128xf32>
    %24 = vector.shape_cast %23 : vector<1x1x128xf32> to vector<1x128xf32>
    %c0_19 = arith.constant 0 : index
    %c0_20 = arith.constant 0 : index
    %c0_21 = arith.constant 0 : index
    %25 = vector.load %arg2[%c0_19, %c0_20, %c0_21] : memref<3x128x128xf32, #tpu.memory_space<vmem>>, vector<1x128x128xf32>
    %26 = vector.shape_cast %25 : vector<1x128x128xf32> to vector<128x128xf32>
    %cst_22 = arith.constant dense<0.000000e+00> : vector<2x128xf32>
    %27 = tpu.matmul %22, %26, %cst_22 {dimension_numbers = #tpu.dot_dimension_numbers<[1], [0], [0], [1], [0, 0, 1, 1], [], []>} : vector<2x128xf32>, vector<128x128xf32>, vector<2x128xf32> -> vector<2x128xf32>
    %c1_23 = arith.constant 1 : index
    %c0_24 = arith.constant 0 : index
    %c0_25 = arith.constant 0 : index
    %28 = vector.load %arg2[%c1_23, %c0_24, %c0_25] : memref<3x128x128xf32, #tpu.memory_space<vmem>>, vector<1x128x128xf32>
    %29 = vector.shape_cast %28 : vector<1x128x128xf32> to vector<128x128xf32>
    %cst_26 = arith.constant dense<0.000000e+00> : vector<2x128xf32>
    %30 = tpu.matmul %22, %29, %cst_26 {dimension_numbers = #tpu.dot_dimension_numbers<[1], [0], [0], [1], [0, 0, 1, 1], [], []>} : vector<2x128xf32>, vector<128x128xf32>, vector<2x128xf32> -> vector<2x128xf32>
    %c2_27 = arith.constant 2 : index
    %c0_28 = arith.constant 0 : index
    %c0_29 = arith.constant 0 : index
    %31 = vector.load %arg2[%c2_27, %c0_28, %c0_29] : memref<3x128x128xf32, #tpu.memory_space<vmem>>, vector<1x128x128xf32>
    %32 = vector.shape_cast %31 : vector<1x128x128xf32> to vector<128x128xf32>
    %cst_30 = arith.constant dense<0.000000e+00> : vector<2x128xf32>
    %33 = tpu.matmul %22, %32, %cst_30 {dimension_numbers = #tpu.dot_dimension_numbers<[1], [0], [0], [1], [0, 0, 1, 1], [], []>} : vector<2x128xf32>, vector<128x128xf32>, vector<2x128xf32> -> vector<2x128xf32>
    %34 = arith.maximumf %30, %33 : vector<2x128xf32>
    %35 = arith.maximumf %27, %34 : vector<2x128xf32>
    %36 = vector.broadcast %24 : vector<1x128xf32> to vector<2x128xf32>
    %37 = arith.addf %35, %36 : vector<2x128xf32>
    %cst_31 = arith.constant 0.000000e+00 : f32
    %38 = vector.broadcast %cst_31 : f32 to vector<2x128xf32>
    %39 = arith.subf %38, %37 : vector<2x128xf32>
    %40 = math.exp %39 : vector<2x128xf32>
    %cst_32 = arith.constant 1.000000e+00 : f32
    %41 = vector.broadcast %cst_32 : f32 to vector<2x128xf32>
    %42 = arith.addf %41, %40 : vector<2x128xf32>
    %cst_33 = arith.constant 1.000000e+00 : f32
    %43 = vector.broadcast %cst_33 : f32 to vector<2x128xf32>
    %44 = arith.divf %43, %42 : vector<2x128xf32>
    %c0_34 = arith.constant 0 : index
    %c0_35 = arith.constant 0 : index
    %45 = vector.load %arg4[%c0_34, %c0_35] : memref<128x128xf32, #tpu.memory_space<vmem>>, vector<128x128xf32>
    %cst_36 = arith.constant dense<0.000000e+00> : vector<2x128xf32>
    %46 = tpu.matmul %44, %45, %cst_36 {dimension_numbers = #tpu.dot_dimension_numbers<[1], [0], [0], [1], [0, 0, 1, 1], [], []>} : vector<2x128xf32>, vector<128x128xf32>, vector<2x128xf32> -> vector<2x128xf32>
    %c2_37 = arith.constant 2 : index
    %c0_38 = arith.constant 0 : index
    %c0_39 = arith.constant 0 : index
    %47 = vector.load %arg3[%c2_37, %c0_38, %c0_39] : memref<4x1x128xf32, #tpu.memory_space<vmem>>, vector<1x1x128xf32>
    %48 = vector.shape_cast %47 : vector<1x1x128xf32> to vector<1x128xf32>
    %49 = vector.broadcast %48 : vector<1x128xf32> to vector<2x128xf32>
    %50 = arith.addf %46, %49 : vector<2x128xf32>
    %cst_40 = arith.constant 0.000000e+00 : f32
    %51 = vector.broadcast %cst_40 : f32 to vector<2x128xf32>
    %52 = arith.subf %51, %50 : vector<2x128xf32>
    %53 = math.exp %52 : vector<2x128xf32>
    %cst_41 = arith.constant 1.000000e+00 : f32
    %54 = vector.broadcast %cst_41 : f32 to vector<2x128xf32>
    %55 = arith.addf %54, %53 : vector<2x128xf32>
    %cst_42 = arith.constant 1.000000e+00 : f32
    %56 = vector.broadcast %cst_42 : f32 to vector<2x128xf32>
    %57 = arith.divf %56, %55 : vector<2x128xf32>
    %c0_43 = arith.constant 0 : index
    %c0_44 = arith.constant 0 : index
    %58 = vector.load %arg5[%c0_43, %c0_44] : memref<128x128xf32, #tpu.memory_space<vmem>>, vector<128x128xf32>
    %cst_45 = arith.constant dense<0.000000e+00> : vector<2x128xf32>
    %59 = tpu.matmul %57, %58, %cst_45 {dimension_numbers = #tpu.dot_dimension_numbers<[1], [0], [0], [1], [0, 0, 1, 1], [], []>} : vector<2x128xf32>, vector<128x128xf32>, vector<2x128xf32> -> vector<2x128xf32>
    %c3 = arith.constant 3 : index
    %c0_46 = arith.constant 0 : index
    %c0_47 = arith.constant 0 : index
    %60 = vector.load %arg3[%c3, %c0_46, %c0_47] : memref<4x1x128xf32, #tpu.memory_space<vmem>>, vector<1x1x128xf32>
    %61 = vector.shape_cast %60 : vector<1x1x128xf32> to vector<1x128xf32>
    %62 = vector.broadcast %61 : vector<1x128xf32> to vector<2x128xf32>
    %63 = arith.addf %59, %62 : vector<2x128xf32>
    %c0_48 = arith.constant 0 : index
    %c0_49 = arith.constant 0 : index
    %64 = vector.load %arg6[%c0_48, %c0_49] : memref<2x128xf32, #tpu.memory_space<vmem>>, vector<2x128xf32>
    tpu.vector_store %arg6[%c0_48, %c0_49], %63 {strides = array<i32>} : memref<2x128xf32, #tpu.memory_space<vmem>>, vector<2x128xf32>,
    return
  }
}

</mosaic_0001>

<llo_original>
// kernel: _lambda_.1
$region0: #{_lambda_.1}
  #allocation0 [shape = 'u32[]', space=smem, size = 0x4, offset = 0x4, fixed_abs, tag = 'smem constant byte address 0x4 - core index']
  #allocation1 [shape = 'u32[72,128]{1,0:T(1,128)}', space=vmem, size = 0x9000, scoped, tag = 'internal scratch']
  %s0 = inlined_call_operand.vmem [shape: f32[2,64], index: 0, kind: input, shape index: {}]
  %s1 = inlined_call_operand.hbm [shape: f32[3,64,128], index: 1, kind: input, shape index: {}]
  %s2 = inlined_call_operand.hbm [shape: f32[3,128,128], index: 2, kind: input, shape index: {}]
  %s3 = inlined_call_operand.vmem [shape: f32[4,1,128], index: 3, kind: input, shape index: {}]
  %s4 = inlined_call_operand.hbm [shape: f32[128,128], index: 4, kind: input, shape index: {}]
  %s5 = inlined_call_operand.hbm [shape: f32[128,128], index: 5, kind: input, shape index: {}]
  %s6 = inlined_call_operand.hbm [shape: f32[2,128], index: 6, kind: output, shape index: {}]
  %s7 = sld [smem:[#allocation0]]
  $region50: #{_lambda_.1} parent=0
    _
  %s9 = ssub.s32 1, %s7
  %s10 = scalar_select 0, %s9, %s7
  $region1: #{_lambda_.1} parent=0
    #allocation2 [shape = 'u8[98304]{0}', space=vmem, size = 0x18000, scoped, tag = 'input window, operand 1, single buffered']
    #allocation3 [shape = 's32[1]{0}', space=sflag, size = 0x4, scoped, tag = 'scoped memory for _lambda_.1']
    #allocation4 [shape = 's32[1]{0}', space=sflag, size = 0x4, scoped, tag = 'scoped memory for _lambda_.1']
    #allocation5 [shape = 'u8[196608]{0}', space=vmem, size = 0x30000, scoped, tag = 'input window, operand 2, single buffered']
    #allocation6 [shape = 's32[1]{0}', space=sflag, size = 0x4, scoped, tag = 'scoped memory for _lambda_.1']
    #allocation7 [shape = 'u8[65536]{0}', space=vmem, size = 0x10000, scoped, tag = 'input window, operand 4, single buffered']
    #allocation8 [shape = 'u8[65536]{0}', space=vmem, size = 0x10000, scoped, tag = 'input window, operand 5, single buffered']
    #allocation9 [shape = 's32[1]{0}', space=sflag, size = 0x4, scoped, tag = 'scoped memory for _lambda_.1']
    #allocation10 [shape = 'u8[1024]{0}', space=vmem, size = 0x400, scoped, tag = 'output window, operand 0, single buffered']
    %11 = vsyncpa [#allocation3], 0
    %12 = vsyncpa [#allocation6], 0
    %13 = vsyncpa [#allocation9], 0
    %14 = vsyncpa [#allocation4], 0
    // Predicated region
    $region2: #{_lambda_.1} parent=1 // pred_check
      _
    $region3: #{_lambda_.1} parent=1 // pred_check_branch
      %16 = sbr.rel (0) target = $region5
    $region4: #{_lambda_.1} parent=1 // pred_region
      _
    $region5: #{_lambda_.1} parent=1 // pred_fallthru
      _
    // Predicated region
    $region6: #{_lambda_.1} parent=1 // pred_check
      _
    $region7: #{_lambda_.1} parent=1 // pred_check_branch
      %18 = sbr.rel (0) target = $region9
    $region8: #{_lambda_.1} parent=1 // pred_region
      %20 = vsyncadd [#allocation3], 0
      %s21 = sshll.u32 %s1, 4
      %s22 = int_to_ptr.hbm [resolvable:$true] %s21
      %s23 = sshll.u32 [#allocation2], 4
      %s24 = int_to_ptr.vmem [resolvable:$true] %s23
      %29 = dma.hbm_to_vmem [thread:$0]  %s22, 3072, %s24, [#allocation3], 128, 128, 8
    $region9: #{_lambda_.1} parent=1 // pred_fallthru
      _
    // Predicated region
    $region10: #{_lambda_.1} parent=1 // pred_check
      _
    $region11: #{_lambda_.1} parent=1 // pred_check_branch
      %31 = sbr.rel (0) target = $region13
    $region12: #{_lambda_.1} parent=1 // pred_region
      %33 = vsyncadd [#allocation6], 0
      %s34 = sshll.u32 %s2, 4
      %s35 = int_to_ptr.hbm [resolvable:$true] %s34
      %s36 = sshll.u32 [#allocation5], 4
      %s37 = int_to_ptr.vmem [resolvable:$true] %s36
      %42 = dma.hbm_to_vmem [thread:$0]  %s35, 6144, %s37, [#allocation6], 128, 128, 8
    $region13: #{_lambda_.1} parent=1 // pred_fallthru
      _
    // Predicated region
    $region14: #{_lambda_.1} parent=1 // pred_check
      _
    $region15: #{_lambda_.1} parent=1 // pred_check_branch
      %44 = sbr.rel (0) target = $region17
    $region16: #{_lambda_.1} parent=1 // pred_region
      _
    $region17: #{_lambda_.1} parent=1 // pred_fallthru
      _
    // Predicated region
    $region18: #{_lambda_.1} parent=1 // pred_check
      _
    $region19: #{_lambda_.1} parent=1 // pred_check_branch
      %46 = sbr.rel (0) target = $region21
    $region20: #{_lambda_.1} parent=1 // pred_region
      %48 = vsyncadd [#allocation6], 0
      %s49 = sshll.u32 %s4, 4
      %s50 = int_to_ptr.hbm [resolvable:$true] %s49
      %s51 = sshll.u32 [#allocation7], 4
      %s52 = int_to_ptr.vmem [resolvable:$true] %s51
      %57 = dma.hbm_to_vmem [thread:$0]  %s50, 2048, %s52, [#allocation6], 128, 128, 8
    $region21: #{_lambda_.1} parent=1 // pred_fallthru
      _
    // Predicated region
    $region22: #{_lambda_.1} parent=1 // pred_check
      _
    $region23: #{_lambda_.1} parent=1 // pred_check_branch
      %59 = sbr.rel (0) target = $region25
    $region24: #{_lambda_.1} parent=1 // pred_region
      %61 = vsyncadd [#allocation9], 0
      %s62 = sshll.u32 %s5, 4
      %s63 = int_to_ptr.hbm [resolvable:$true] %s62
      %s64 = sshll.u32 [#allocation8], 4
      %s65 = int_to_ptr.vmem [resolvable:$true] %s64
      %70 = dma.hbm_to_vmem [thread:$0]  %s63, 2048, %s65, [#allocation9], 128, 128, 8
    $region25: #{_lambda_.1} parent=1 // pred_fallthru
      _
    // Predicated region
    $region26: #{_lambda_.1} parent=1 // pred_check
      _
    $region27: #{_lambda_.1} parent=1 // pred_check_branch
      %72 = sbr.rel (0) target = $region29
    $region28: #{_lambda_.1} parent=1 // pred_region
      %74 = dma.done [#allocation3], 3072
    $region29: #{_lambda_.1} parent=1 // pred_fallthru
      _
    // Predicated region
    $region30: #{_lambda_.1} parent=1 // pred_check
      _
    $region31: #{_lambda_.1} parent=1 // pred_check_branch
      %76 = sbr.rel (0) target = $region33
    $region32: #{_lambda_.1} parent=1 // pred_region
      %78 = dma.done [#allocation6], 6144
    $region33: #{_lambda_.1} parent=1 // pred_fallthru
      _
    // Predicated region
    $region34: #{_lambda_.1} parent=1 // pred_check
      _
    $region35: #{_lambda_.1} parent=1 // pred_check_branch
      %80 = sbr.rel (0) target = $region37
    $region36: #{_lambda_.1} parent=1 // pred_region
      %82 = dma.done [#allocation6], 2048
    $region37: #{_lambda_.1} parent=1 // pred_fallthru
      _
    // Predicated region
    $region38: #{_lambda_.1} parent=1 // pred_check
      _
    $region39: #{_lambda_.1} parent=1 // pred_check_branch
      %84 = sbr.rel (0) target = $region41
    $region40: #{_lambda_.1} parent=1 // pred_region
      %86 = dma.done [#allocation9], 2048
    $region41: #{_lambda_.1} parent=1 // pred_fallthru
      _
    %v87 = vld [vmem:[%s0] sm:$0x3]
    %v88 = vld [vmem:[%s3] sm:$0x1]
    %v89 = vld [vmem:[#allocation2] sm:$0xff]
    %v90 = vld [vmem:[#allocation2 + $0x8] sm:$0xff]
    %v91 = vld [vmem:[#allocation2 + $0x10] sm:$0xff]
    %v92 = vld [vmem:[#allocation2 + $0x18] sm:$0xff]
    %v93 = vld [vmem:[#allocation2 + $0x20] sm:$0xff]
    %v94 = vld [vmem:[#allocation2 + $0x28] sm:$0xff]
    %v95 = vld [vmem:[#allocation2 + $0x30] sm:$0xff]
    %v96 = vld [vmem:[#allocation2 + $0x38] sm:$0xff]
    %vm97 = vcmask 523264
    %v99 = vsel %vm97, %v87, 0
    %101 = vmatpush.msra.mxu0 0.0
    %102 = vmatpush.msra.mxu0 0.0
    %103 = vmatpush.msra.mxu0 0.0
    %104 = vmatpush.msra.mxu0 0.0
    %105 = vmatpush.msra.mxu0 0.0
    %106 = vmatpush.msra.mxu0 0.0
    %107 = vmatpush.msra.mxu0 0.0
    %108 = vmatpush.msra.mxu0 0.0
    %109 = vmatpush.msra.mxu0 %v96
    %110 = vmatpush.msra.mxu0 %v95
    %111 = vmatpush.msra.mxu0 %v94
    %112 = vmatpush.msra.mxu0 %v93
    %113 = vmatpush.msra.mxu0 %v92
    %114 = vmatpush.msra.mxu0 %v91
    %115 = vmatpush.msra.mxu0 %v90
    %116 = vmatpush.msra.mxu0 %v89
    %117 = vmatmul.f32.gmra.mxu0 %v99
    %v118 = vpop.f32.mrf.mxu0
    %v119 = vadd.f32 0.0, %v118
    %120 = vdwg.mxu0
    %s121 = scalar_lea.vmem [#allocation2], 64
    %v122 = vld [vmem:[%s121] sm:$0xff]
    %v123 = vld [vmem:[%s121 + $0x8] sm:$0xff]
    %v124 = vld [vmem:[%s121 + $0x10] sm:$0xff]
    %v125 = vld [vmem:[%s121 + $0x18] sm:$0xff]
    %v126 = vld [vmem:[%s121 + $0x20] sm:$0xff]
    %v127 = vld [vmem:[%s121 + $0x28] sm:$0xff]
    %v128 = vld [vmem:[%s121 + $0x30] sm:$0xff]
    %v129 = vld [vmem:[%s121 + $0x38] sm:$0xff]
    %130 = vmatpush.msra.mxu0 0.0
    %131 = vmatpush.msra.mxu0 0.0
    %132 = vmatpush.msra.mxu0 0.0
    %133 = vmatpush.msra.mxu0 0.0
    %134 = vmatpush.msra.mxu0 0.0
    %135 = vmatpush.msra.mxu0 0.0
    %136 = vmatpush.msra.mxu0 0.0
    %137 = vmatpush.msra.mxu0 0.0
    %138 = vmatpush.msra.mxu0 %v129
    %139 = vmatpush.msra.mxu0 %v128
    %140 = vmatpush.msra.mxu0 %v127
    %141 = vmatpush.msra.mxu0 %v126
    %142 = vmatpush.msra.mxu0 %v125
    %143 = vmatpush.msra.mxu0 %v124
    %144 = vmatpush.msra.mxu0 %v123
    %145 = vmatpush.msra.mxu0 %v122
    %146 = vmatmul.f32.gmra.mxu0 %v99
    %v147 = vpop.f32.mrf.mxu0
    %v148 = vadd.f32 0.0, %v147
    %149 = vdwg.mxu0
    %s150 = scalar_lea.vmem [#allocation2], 128
    %v151 = vld [vmem:[%s150] sm:$0xff]
    %v152 = vld [vmem:[%s150 + $0x8] sm:$0xff]
    %v153 = vld [vmem:[%s150 + $0x10] sm:$0xff]
    %v154 = vld [vmem:[%s150 + $0x18] sm:$0xff]
    %v155 = vld [vmem:[%s150 + $0x20] sm:$0xff]
    %v156 = vld [vmem:[%s150 + $0x28] sm:$0xff]
    %v157 = vld [vmem:[%s150 + $0x30] sm:$0xff]
    %v158 = vld [vmem:[%s150 + $0x38] sm:$0xff]
    %159 = vmatpush.msra.mxu0 0.0
    %160 = vmatpush.msra.mxu0 0.0
    %161 = vmatpush.msra.mxu0 0.0
    %162 = vmatpush.msra.mxu0 0.0
    %163 = vmatpush.msra.mxu0 0.0
    %164 = vmatpush.msra.mxu0 0.0
    %165 = vmatpush.msra.mxu0 0.0
    %166 = vmatpush.msra.mxu0 0.0
    %167 = vmatpush.msra.mxu0 %v158
    %168 = vmatpush.msra.mxu0 %v157
    %169 = vmatpush.msra.mxu0 %v156
    %170 = vmatpush.msra.mxu0 %v155
    %171 = vmatpush.msra.mxu0 %v154
    %172 = vmatpush.msra.mxu0 %v153
    %173 = vmatpush.msra.mxu0 %v152
    %174 = vmatpush.msra.mxu0 %v151
    %175 = vmatmul.f32.gmra.mxu0 %v99
    %v176 = vpop.f32.mrf.mxu0
    %v177 = vadd.f32 0.0, %v176
    %178 = vdwg.mxu0
    %v179 = vmax.f32 %v148, %v177
    %v180 = vmax.f32 %v119, %v179
    %v182 = vperm.slane %v88, 0
    %v184 = vadd.f32 %v180, %v182
    %v185 = vsub.f32 0.0, %v184
    %v186 = vmul.f32 %v185, 1.442695
    %v187 = vpow.pop %v186
    %v188 = vadd.f32 %v187, 1.0
    %v189 = vrcp.pop %v188
    %v190 = vmul.f32 %v188, %v189
    %v191 = vsub.f32 1.0, %v190
    %v192 = vmul.f32 %v189, %v191
    %v193 = vadd.f32 %v189, %v192
    %vm194 = vweird.f32 %v188
    %vm195 = vweird.f32 %v189
    %vm196 = vmor %vm194, %vm195
    %v197 = vsel %vm196, %v189, %v193
    %v198 = vand.u32 2147483647, %v188
    %vm199 = vcmp.eq.f32.partialorder %v198, 8.507059e+37
    %v200 = vand.u32 %v188, 2147483648
    %v201 = vor.u32 1.1754944e-38, %v200
    %v202 = vsel %vm199, %v201, %v197
    %v203 = vmul.f32 1.0, %v202
    %s204 = scalar_lea.vmem %s3, 1
    %v205 = vld [vmem:[%s204] sm:$0x1]
    %v206 = vld [vmem:[#allocation5] sm:$0xff]
    %v207 = vld [vmem:[#allocation5 + $0x8] sm:$0xff]
    %v208 = vld [vmem:[#allocation5 + $0x10] sm:$0xff]
    %v209 = vld [vmem:[#allocation5 + $0x18] sm:$0xff]
    %v210 = vld [vmem:[#allocation5 + $0x20] sm:$0xff]
    %v211 = vld [vmem:[#allocation5 + $0x28] sm:$0xff]
    %v212 = vld [vmem:[#allocation5 + $0x30] sm:$0xff]
    %v213 = vld [vmem:[#allocation5 + $0x38] sm:$0xff]
    %v214 = vld [vmem:[#allocation5 + $0x40] sm:$0xff]
    %v215 = vld [vmem:[#allocation5 + $0x48] sm:$0xff]
    %v216 = vld [vmem:[#allocation5 + $0x50] sm:$0xff]
    %v217 = vld [vmem:[#allocation5 + $0x58] sm:$0xff]
    %v218 = vld [vmem:[#allocation5 + $0x60] sm:$0xff]
    %v219 = vld [vmem:[#allocation5 + $0x68] sm:$0xff]
    %v220 = vld [vmem:[#allocation5 + $0x70] sm:$0xff]
    %v221 = vld [vmem:[#allocation5 + $0x78] sm:$0xff]
    %222 = vmatpush.msra.mxu0 %v221
    %223 = vmatpush.msra.mxu0 %v220
    %224 = vmatpush.msra.mxu0 %v219
    %225 = vmatpush.msra.mxu0 %v218
    %226 = vmatpush.msra.mxu0 %v217
    %227 = vmatpush.msra.mxu0 %v216
    %228 = vmatpush.msra.mxu0 %v215
    %229 = vmatpush.msra.mxu0 %v214
    %230 = vmatpush.msra.mxu0 %v213
    %231 = vmatpush.msra.mxu0 %v212
    %232 = vmatpush.msra.mxu0 %v211
    %233 = vmatpush.msra.mxu0 %v210
    %234 = vmatpush.msra.mxu0 %v209
    %235 = vmatpush.msra.mxu0 %v208
    %236 = vmatpush.msra.mxu0 %v207
    %237 = vmatpush.msra.mxu0 %v206
    %238 = vmatmul.f32.gmra.mxu0 %v203
    %v239 = vpop.f32.mrf.mxu0
    %v240 = vadd.f32 0.0, %v239
    %241 = vdwg.mxu0
    %s242 = scalar_lea.vmem [#allocation5], 128
    %v243 = vld [vmem:[%s242] sm:$0xff]
    %v244 = vld [vmem:[%s242 + $0x8] sm:$0xff]
    %v245 = vld [vmem:[%s242 + $0x10] sm:$0xff]
    %v246 = vld [vmem:[%s242 + $0x18] sm:$0xff]
    %v247 = vld [vmem:[%s242 + $0x20] sm:$0xff]
    %v248 = vld [vmem:[%s242 + $0x28] sm:$0xff]
    %v249 = vld [vmem:[%s242 + $0x30] sm:$0xff]
    %v250 = vld [vmem:[%s242 + $0x38] sm:$0xff]
    %v251 = vld [vmem:[%s242 + $0x40] sm:$0xff]
    %v252 = vld [vmem:[%s242 + $0x48] sm:$0xff]
    %v253 = vld [vmem:[%s242 + $0x50] sm:$0xff]
    %v254 = vld [vmem:[%s242 + $0x58] sm:$0xff]
    %v255 = vld [vmem:[%s242 + $0x60] sm:$0xff]
    %v256 = vld [vmem:[%s242 + $0x68] sm:$0xff]
    %v257 = vld [vmem:[%s242 + $0x70] sm:$0xff]
    %v258 = vld [vmem:[%s242 + $0x78] sm:$0xff]
    %259 = vmatpush.msra.mxu0 %v258
    %260 = vmatpush.msra.mxu0 %v257
    %261 = vmatpush.msra.mxu0 %v256
    %262 = vmatpush.msra.mxu0 %v255
    %263 = vmatpush.msra.mxu0 %v254
    %264 = vmatpush.msra.mxu0 %v253
    %265 = vmatpush.msra.mxu0 %v252
    %266 = vmatpush.msra.mxu0 %v251
    %267 = vmatpush.msra.mxu0 %v250
    %268 = vmatpush.msra.mxu0 %v249
    %269 = vmatpush.msra.mxu0 %v248
    %270 = vmatpush.msra.mxu0 %v247
    %271 = vmatpush.msra.mxu0 %v246
    %272 = vmatpush.msra.mxu0 %v245
    %273 = vmatpush.msra.mxu0 %v244
    %274 = vmatpush.msra.mxu0 %v243
    %275 = vmatmul.f32.gmra.mxu0 %v203
    %v276 = vpop.f32.mrf.mxu0
    %v277 = vadd.f32 0.0, %v276
    %278 = vdwg.mxu0
    %s279 = scalar_lea.vmem [#allocation5], 256
    %v280 = vld [vmem:[%s279] sm:$0xff]
    %v281 = vld [vmem:[%s279 + $0x8] sm:$0xff]
    %v282 = vld [vmem:[%s279 + $0x10] sm:$0xff]
    %v283 = vld [vmem:[%s279 + $0x18] sm:$0xff]
    %v284 = vld [vmem:[%s279 + $0x20] sm:$0xff]
    %v285 = vld [vmem:[%s279 + $0x28] sm:$0xff]
    %v286 = vld [vmem:[%s279 + $0x30] sm:$0xff]
    %v287 = vld [vmem:[%s279 + $0x38] sm:$0xff]
    %v288 = vld [vmem:[%s279 + $0x40] sm:$0xff]
    %v289 = vld [vmem:[%s279 + $0x48] sm:$0xff]
    %v290 = vld [vmem:[%s279 + $0x50] sm:$0xff]
    %v291 = vld [vmem:[%s279 + $0x58] sm:$0xff]
    %v292 = vld [vmem:[%s279 + $0x60] sm:$0xff]
    %v293 = vld [vmem:[%s279 + $0x68] sm:$0xff]
    %v294 = vld [vmem:[%s279 + $0x70] sm:$0xff]
    %v295 = vld [vmem:[%s279 + $0x78] sm:$0xff]
    %296 = vmatpush.msra.mxu0 %v295
    %297 = vmatpush.msra.mxu0 %v294
    %298 = vmatpush.msra.mxu0 %v293
    %299 = vmatpush.msra.mxu0 %v292
    %300 = vmatpush.msra.mxu0 %v291
    %301 = vmatpush.msra.mxu0 %v290
    %302 = vmatpush.msra.mxu0 %v289
    %303 = vmatpush.msra.mxu0 %v288
    %304 = vmatpush.msra.mxu0 %v287
    %305 = vmatpush.msra.mxu0 %v286
    %306 = vmatpush.msra.mxu0 %v285
    %307 = vmatpush.msra.mxu0 %v284
    %308 = vmatpush.msra.mxu0 %v283
    %309 = vmatpush.msra.mxu0 %v282
    %310 = vmatpush.msra.mxu0 %v281
    %311 = vmatpush.msra.mxu0 %v280
    %312 = vmatmul.f32.gmra.mxu0 %v203
    %v313 = vpop.f32.mrf.mxu0
    %v314 = vadd.f32 0.0, %v313
    %315 = vdwg.mxu0
    %v316 = vmax.f32 %v277, %v314
    %v317 = vmax.f32 %v240, %v316
    %v319 = vperm.slane %v205, 0
    %v321 = vadd.f32 %v317, %v319
    %v322 = vsub.f32 0.0, %v321
    %v323 = vmul.f32 %v322, 1.442695
    %v324 = vpow.pop %v323
    %v325 = vadd.f32 %v324, 1.0
    %v326 = vrcp.pop %v325
    %v327 = vmul.f32 %v325, %v326
    %v328 = vsub.f32 1.0, %v327
    %v329 = vmul.f32 %v326, %v328
    %v330 = vadd.f32 %v326, %v329
    %vm331 = vweird.f32 %v325
    %vm332 = vweird.f32 %v326
    %vm333 = vmor %vm331, %vm332
    %v334 = vsel %vm333, %v326, %v330
    %v335 = vand.u32 2147483647, %v325
    %vm336 = vcmp.eq.f32.partialorder %v335, 8.507059e+37
    %v337 = vand.u32 %v325, 2147483648
    %v338 = vor.u32 1.1754944e-38, %v337
    %v339 = vsel %vm336, %v338, %v334
    %v340 = vmul.f32 1.0, %v339
    %v341 = vld [vmem:[#allocation7] sm:$0xff]
    %v342 = vld [vmem:[#allocation7 + $0x8] sm:$0xff]
    %v343 = vld [vmem:[#allocation7 + $0x10] sm:$0xff]
    %v344 = vld [vmem:[#allocation7 + $0x18] sm:$0xff]
    %v345 = vld [vmem:[#allocation7 + $0x20] sm:$0xff]
    %v346 = vld [vmem:[#allocation7 + $0x28] sm:$0xff]
    %v347 = vld [vmem:[#allocation7 + $0x30] sm:$0xff]
    %v348 = vld [vmem:[#allocation7 + $0x38] sm:$0xff]
    %v349 = vld [vmem:[#allocation7 + $0x40] sm:$0xff]
    %v350 = vld [vmem:[#allocation7 + $0x48] sm:$0xff]
    %v351 = vld [vmem:[#allocation7 + $0x50] sm:$0xff]
    %v352 = vld [vmem:[#allocation7 + $0x58] sm:$0xff]
    %v353 = vld [vmem:[#allocation7 + $0x60] sm:$0xff]
    %v354 = vld [vmem:[#allocation7 + $0x68] sm:$0xff]
    %v355 = vld [vmem:[#allocation7 + $0x70] sm:$0xff]
    %v356 = vld [vmem:[#allocation7 + $0x78] sm:$0xff]
    %s357 = scalar_lea.vmem %s3, 2
    %v358 = vld [vmem:[%s357] sm:$0x1]
    %v360 = vperm.slane %v358, 0
    %362 = vmatpush.msra.mxu0 %v356
    %363 = vmatpush.msra.mxu0 %v355
    %364 = vmatpush.msra.mxu0 %v354
    %365 = vmatpush.msra.mxu0 %v353
    %366 = vmatpush.msra.mxu0 %v352
    %367 = vmatpush.msra.mxu0 %v351
    %368 = vmatpush.msra.mxu0 %v350
    %369 = vmatpush.msra.mxu0 %v349
    %370 = vmatpush.msra.mxu0 %v348
    %371 = vmatpush.msra.mxu0 %v347
    %372 = vmatpush.msra.mxu0 %v346
    %373 = vmatpush.msra.mxu0 %v345
    %374 = vmatpush.msra.mxu0 %v344
    %375 = vmatpush.msra.mxu0 %v343
    %376 = vmatpush.msra.mxu0 %v342
    %377 = vmatpush.msra.mxu0 %v341
    %378 = vmatmul.f32.gmra.mxu0 %v340
    %v379 = vpop.f32.mrf.mxu0
    %v380 = vadd.f32 %v360, %v379
    %381 = vdwg.mxu0
    %v382 = vsub.f32 0.0, %v380
    %v383 = vmul.f32 %v382, 1.442695
    %v384 = vpow.pop %v383
    %v385 = vadd.f32 %v384, 1.0
    %v386 = vrcp.pop %v385
    %v387 = vmul.f32 %v385, %v386
    %v388 = vsub.f32 1.0, %v387
    %v389 = vmul.f32 %v386, %v388
    %v390 = vadd.f32 %v386, %v389
    %vm391 = vweird.f32 %v385
    %vm392 = vweird.f32 %v386
    %vm393 = vmor %vm391, %vm392
    %v394 = vsel %vm393, %v386, %v390
    %v395 = vand.u32 2147483647, %v385
    %vm396 = vcmp.eq.f32.partialorder %v395, 8.507059e+37
    %v397 = vand.u32 %v385, 2147483648
    %v398 = vor.u32 1.1754944e-38, %v397
    %v399 = vsel %vm396, %v398, %v394
    %v400 = vmul.f32 1.0, %v399
    %v401 = vld [vmem:[#allocation8] sm:$0xff]
    %v402 = vld [vmem:[#allocation8 + $0x8] sm:$0xff]
    %v403 = vld [vmem:[#allocation8 + $0x10] sm:$0xff]
    %v404 = vld [vmem:[#allocation8 + $0x18] sm:$0xff]
    %v405 = vld [vmem:[#allocation8 + $0x20] sm:$0xff]
    %v406 = vld [vmem:[#allocation8 + $0x28] sm:$0xff]
    %v407 = vld [vmem:[#allocation8 + $0x30] sm:$0xff]
    %v408 = vld [vmem:[#allocation8 + $0x38] sm:$0xff]
    %v409 = vld [vmem:[#allocation8 + $0x40] sm:$0xff]
    %v410 = vld [vmem:[#allocation8 + $0x48] sm:$0xff]
    %v411 = vld [vmem:[#allocation8 + $0x50] sm:$0xff]
    %v412 = vld [vmem:[#allocation8 + $0x58] sm:$0xff]
    %v413 = vld [vmem:[#allocation8 + $0x60] sm:$0xff]
    %v414 = vld [vmem:[#allocation8 + $0x68] sm:$0xff]
    %v415 = vld [vmem:[#allocation8 + $0x70] sm:$0xff]
    %v416 = vld [vmem:[#allocation8 + $0x78] sm:$0xff]
    %s417 = scalar_lea.vmem %s3, 3
    %v418 = vld [vmem:[%s417] sm:$0x1]
    %v420 = vperm.slane %v418, 0
    %422 = vmatpush.msra.mxu0 %v416
    %423 = vmatpush.msra.mxu0 %v415
    %424 = vmatpush.msra.mxu0 %v414
    %425 = vmatpush.msra.mxu0 %v413
    %426 = vmatpush.msra.mxu0 %v412
    %427 = vmatpush.msra.mxu0 %v411
    %428 = vmatpush.msra.mxu0 %v410
    %429 = vmatpush.msra.mxu0 %v409
    %430 = vmatpush.msra.mxu0 %v408
    %431 = vmatpush.msra.mxu0 %v407
    %432 = vmatpush.msra.mxu0 %v406
    %433 = vmatpush.msra.mxu0 %v405
    %434 = vmatpush.msra.mxu0 %v404
    %435 = vmatpush.msra.mxu0 %v403
    %436 = vmatpush.msra.mxu0 %v402
    %437 = vmatpush.msra.mxu0 %v401
    %438 = vmatmul.f32.gmra.mxu0 %v400
    %v439 = vpop.f32.mrf.mxu0
    %v440 = vadd.f32 %v420, %v439
    %441 = vdwg.mxu0
    %442 = vst [vmem:[#allocation10] sm:$0x3] %v440
    // Predicated region
    $region42: #{_lambda_.1} parent=1 // pred_check
      _
    $region43: #{_lambda_.1} parent=1 // pred_check_branch
      %444 = sbr.rel (0) target = $region45
    $region44: #{_lambda_.1} parent=1 // pred_region
      %446 = vsyncadd [#allocation4], 0
      %s448 = sshll.u32 [#allocation10], 4
      %s449 = int_to_ptr.vmem [resolvable:$true] %s448
      %s450 = sshll.u32 %s6, 4
      %s451 = int_to_ptr.hbm [resolvable:$true] %s450
      %453 = dma.vmem_to_hbm [thread:$0]  %s449, 32, %s451, [#allocation4]
    $region45: #{_lambda_.1} parent=1 // pred_fallthru
      _
    // Predicated region
    $region46: #{_lambda_.1} parent=1 // pred_check
      _
    $region47: #{_lambda_.1} parent=1 // pred_check_branch
      %455 = sbr.rel (0) target = $region49
    $region48: #{_lambda_.1} parent=1 // pred_region
      %457 = dma.done [#allocation4], 32
    $region49: #{_lambda_.1} parent=1 // pred_fallthru
      _
    %458 = vsyncpa [#allocation3], 1
    %459 = vsyncpa [#allocation6], 1
    %460 = vsyncpa [#allocation9], 1
    %461 = vsyncpa [#allocation4], 1

</llo_original>
